<compile_context>
chip_gen: v6e
topology: v6e:2x2x1
jax: 0.10.0
libtpu: 0.0.40
codegen_flags: <defaults>
</compile_context>

<pallas_src>
import jax
import jax.numpy as jnp
from jax.experimental import pallas as pl
from jax.experimental.pallas import tpu as pltpu

T_DIM = 150          # text embedding dim
C_DIM = 150          # conditioning dim
LANE_SPLIT = 256     # vreg-aligned lane offset where the logvar half of the fused weight lives
W_FUSED = 2 * LANE_SPLIT  # 512 fused-weight output lanes
TILE_M = 2048        # rows per grid step (slimmed tiles: ~12.5 MB double-buffered VMEM)


def _round_up(x, m):
    return (x + m - 1) // m * m


def _ca_net_kernel(x_ref, w_ref, b_ref, eps_ref, c_ref, mu_ref, lv_ref):
    # x_ref:   (tile_m, 150)  f32
    # w_ref:   (150, 512)     f32; mu weights in lanes [0,150), logvar weights in [256,406), 0 elsewhere
    # b_ref:   (1, 512)       f32; packed the same way
    # eps_ref: (tile_m, 150)  f32
    # c/mu/lv: (tile_m, 150)  f32 outputs (native width -> no padded writeback)
    x = x_ref[...]

    # One fused MXU matmul; bias add + relu on the padded lanes is harmless (relu(0+0)=0, unused).
    h = jnp.dot(x, w_ref[...], preferred_element_type=jnp.float32) + b_ref[...]
    h = jnp.maximum(h, 0.0)

    mu = h[:, :C_DIM]                              # lanes [0, 150)   — lane-0-aligned slice
    logvar = h[:, LANE_SPLIT:LANE_SPLIT + C_DIM]   # lanes [256, 406) — vreg-aligned start

    # Reparametrization trick: c = eps * exp(0.5 * logvar) + mu
    std = jnp.exp(0.5 * logvar)
    c = eps_ref[...] * std + mu

    c_ref[...] = c.astype(c_ref.dtype)
    mu_ref[...] = mu.astype(mu_ref.dtype)
    lv_ref[...] = logvar.astype(lv_ref.dtype)


@jax.jit
def ca_net_forward(text_embedding, w, b, eps):
    """CA_NET forward.

    text_embedding: (B, S, T_DIM); w: (T_DIM, 2*C_DIM); b: (2*C_DIM,);
    eps: (B, S, C_DIM) standard-normal noise (explicit input for determinism).
    Returns (c_code, mu, logvar), each (B, S, C_DIM) float32.
    """
    B, S, T = text_embedding.shape
    assert T == T_DIM
    M = B * S

    # Cap the tile so the parallel row axis has >= 2 steps whenever M allows it (v7x: both TCs busy).
    tile_m = min(TILE_M, max(8, _round_up(pl.cdiv(M, 2), 8)))
    grid_m = pl.cdiv(M, tile_m)   # partial tail tile is fine: rows are independent, OOB rows never stored

    # Contiguous reshapes only — no padding / copy passes on the big per-row tensors.
    x2d = text_embedding.reshape(M, T_DIM).astype(jnp.float32)
    eps2d = eps.reshape(M, C_DIM).astype(jnp.float32)

    # One-time tiny weight repack (0.3 MB): mu weights at lanes [0,150), logvar at [256,406).
    w = w.astype(jnp.float32)
    b = b.astype(jnp.float32)
    pad = LANE_SPLIT - C_DIM
    w_fused = jnp.concatenate(
        [jnp.pad(w[:, :C_DIM], ((0, 0), (0, pad))),
         jnp.pad(w[:, C_DIM:], ((0, 0), (0, pad)))], axis=1)                      # (150, 512)
    b_fused = jnp.concatenate(
        [jnp.pad(b[:C_DIM], (0, pad)), jnp.pad(b[C_DIM:], (0, pad))]).reshape(1, W_FUSED)

    row_spec = lambda width: pl.BlockSpec((tile_m, width), lambda i: (i, 0))
    resident = lambda shape: pl.BlockSpec(shape, lambda i: (0, 0))  # fetched once, reused across grid

    out_shapes = tuple(
        jax.ShapeDtypeStruct((M, C_DIM), jnp.float32) for _ in range(3))

    c2d, mu2d, lv2d = pl.pallas_call(
        _ca_net_kernel,
        out_shape=out_shapes,
        grid=(grid_m,),
        in_specs=[
            row_spec(T_DIM),                 # x        (tiled over rows, native 150 lanes)
            resident((T_DIM, W_FUSED)),      # w_fused  (resident across grid)
            resident((1, W_FUSED)),          # b_fused
            row_spec(C_DIM),                 # eps      (tiled over rows, native 150 lanes)
        ],
        out_specs=(
            row_spec(C_DIM),                 # c_code   (native 150-lane writeback)
            row_spec(C_DIM),                 # mu
            row_spec(C_DIM),                 # logvar
        ),
        compiler_params=pltpu.CompilerParams(
            dimension_semantics=("parallel",),        # shard row tiles across v7x's 2 TCs
            vmem_limit_bytes=32 * 1024 * 1024),       # safe headroom on v5e; default on v6e/v7x
    )(x2d, w_fused, b_fused, eps2d)

    c_code = c2d.reshape(B, S, C_DIM)
    mu = mu2d.reshape(B, S, C_DIM)
    logvar = lv2d.reshape(B, S, C_DIM)
    return c_code, mu, logvar


def _reference(text_embedding, w, b, eps):
    h = jnp.maximum(jnp.einsum("bst,tc->bsc", text_embedding, w) + b, 0.0)
    mu = h[:, :, :C_DIM]
    logvar = h[:, :, C_DIM:]
    std = jnp.exp(0.5 * logvar)
    return eps * std + mu, mu, logvar


if __name__ == "__main__":
    key = jax.random.PRNGKey(0)
    k_x, k_w, k_b, k_eps = jax.random.split(key, 4)

    B, S = 2, 8  # small synthetic batch / sequence

    # nn.Linear default init: U(-1/sqrt(in), 1/sqrt(in))
    bound = 1.0 / jnp.sqrt(jnp.float32(T_DIM))
    w = jax.random.uniform(k_w, (T_DIM, 2 * C_DIM), jnp.float32, -bound, bound)
    b = jax.random.uniform(k_b, (2 * C_DIM,), jnp.float32, -bound, bound)

    text_embedding = jax.random.normal(k_x, (B, S, T_DIM), jnp.float32)
    # eps ~ N(0, 1), generated outside the kernel (matches torch .normal_(0, 1), but deterministic)
    eps = jax.random.normal(k_eps, (B, S, C_DIM), jnp.float32)

    c_code, mu, logvar = ca_net_forward(text_embedding, w, b, eps)
    jax.block_until_ready((c_code, mu, logvar))

    c_ref, mu_ref, lv_ref = _reference(text_embedding, w, b, eps)
    assert jnp.allclose(c_code, c_ref, atol=1e-4, rtol=1e-4)
    assert jnp.allclose(mu, mu_ref, atol=1e-4, rtol=1e-4)
    assert jnp.allclose(logvar, lv_ref, atol=1e-4, rtol=1e-4)

    print("KERNEL_OK")
</pallas_src>

<mosaic_0001>
module attributes {stable_mosaic.version = 11 : i64} {
  func.func @_ca_net_kernel(%arg0: i32, %arg1: memref<8x150xf32, #tpu.memory_space<vmem>>, %arg2: memref<150x512xf32, #tpu.memory_space<vmem>>, %arg3: memref<1x512xf32, #tpu.memory_space<vmem>>, %arg4: memref<8x150xf32, #tpu.memory_space<vmem>>, %arg5: memref<8x150xf32, #tpu.memory_space<vmem>>, %arg6: memref<8x150xf32, #tpu.memory_space<vmem>>, %arg7: memref<8x150xf32, #tpu.memory_space<vmem>>) attributes {dimension_semantics = [#tpu.dimension_semantics<parallel>], iteration_bounds = array<i64: 2>, scalar_prefetch = 0 : i64, scratch_operands = 0 : i64, tpu.core_type = #tpu.core_type<tc>, window_params = [{transform_indices = @transform_0, window_bounds = array<i64: 8, 150>}, {pipeline_mode = #tpu.pipeline_mode<synchronous>, transform_indices = @transform_1, window_bounds = array<i64: 150, 512>}, {pipeline_mode = #tpu.pipeline_mode<synchronous>, transform_indices = @transform_2, window_bounds = array<i64: 1, 512>}, {transform_indices = @transform_3, window_bounds = array<i64: 8, 150>}, {transform_indices = @transform_4, window_bounds = array<i64: 8, 150>}, {transform_indices = @transform_5, window_bounds = array<i64: 8, 150>}, {transform_indices = @transform_6, window_bounds = array<i64: 8, 150>}]} {
    %c0 = arith.constant 0 : index
    %c0_0 = arith.constant 0 : index
    %0 = vector.load %arg1[%c0, %c0_0] : memref<8x150xf32, #tpu.memory_space<vmem>>, vector<8x150xf32>
    %c0_1 = arith.constant 0 : index
    %c0_2 = arith.constant 0 : index
    %1 = vector.load %arg2[%c0_1, %c0_2] : memref<150x512xf32, #tpu.memory_space<vmem>>, vector<150x512xf32>
    %cst = arith.constant dense<0.000000e+00> : vector<8x512xf32>
    %2 = tpu.matmul %0, %1, %cst {dimension_numbers = #tpu.dot_dimension_numbers<[1], [0], [0], [1], [0, 0, 1, 1], [], []>} : vector<8x150xf32>, vector<150x512xf32>, vector<8x512xf32> -> vector<8x512xf32>
    %c0_3 = arith.constant 0 : index
    %c0_4 = arith.constant 0 : index
    %3 = vector.load %arg3[%c0_3, %c0_4] : memref<1x512xf32, #tpu.memory_space<vmem>>, vector<1x512xf32>
    %4 = vector.broadcast %3 : vector<1x512xf32> to vector<8x512xf32>
    %5 = arith.addf %2, %4 : vector<8x512xf32>
    %cst_5 = arith.constant 0.000000e+00 : f32
    %6 = vector.broadcast %cst_5 : f32 to vector<8x512xf32>
    %7 = arith.maximumf %5, %6 : vector<8x512xf32>
    %8 = vector.extract_strided_slice %7 {offsets = [0, 0], sizes = [8, 150], strides = [1, 1]} : vector<8x512xf32> to vector<8x150xf32>
    %9 = vector.extract_strided_slice %7 {offsets = [0, 256], sizes = [8, 150], strides = [1, 1]} : vector<8x512xf32> to vector<8x150xf32>
    %cst_6 = arith.constant 5.000000e-01 : f32
    %10 = vector.broadcast %cst_6 : f32 to vector<8x150xf32>
    %11 = arith.mulf %10, %9 : vector<8x150xf32>
    %12 = math.exp %11 : vector<8x150xf32>
    %c0_7 = arith.constant 0 : index
    %c0_8 = arith.constant 0 : index
    %13 = vector.load %arg4[%c0_7, %c0_8] : memref<8x150xf32, #tpu.memory_space<vmem>>, vector<8x150xf32>
    %14 = arith.mulf %13, %12 : vector<8x150xf32>
    %15 = arith.addf %14, %8 : vector<8x150xf32>
    %c0_9 = arith.constant 0 : index
    %c0_10 = arith.constant 0 : index
    %16 = vector.load %arg5[%c0_9, %c0_10] : memref<8x150xf32, #tpu.memory_space<vmem>>, vector<8x150xf32>
    tpu.vector_store %arg5[%c0_9, %c0_10], %15 {strides = array<i32>} : memref<8x150xf32, #tpu.memory_space<vmem>>, vector<8x150xf32>,
    %c0_11 = arith.constant 0 : index
    %c0_12 = arith.constant 0 : index
    %17 = vector.load %arg6[%c0_11, %c0_12] : memref<8x150xf32, #tpu.memory_space<vmem>>, vector<8x150xf32>
    tpu.vector_store %arg6[%c0_11, %c0_12], %8 {strides = array<i32>} : memref<8x150xf32, #tpu.memory_space<vmem>>, vector<8x150xf32>,
    %c0_13 = arith.constant 0 : index
    %c0_14 = arith.constant 0 : index
    %18 = vector.load %arg7[%c0_13, %c0_14] : memref<8x150xf32, #tpu.memory_space<vmem>>, vector<8x150xf32>
    tpu.vector_store %arg7[%c0_13, %c0_14], %9 {strides = array<i32>} : memref<8x150xf32, #tpu.memory_space<vmem>>, vector<8x150xf32>,
    return
  }
  func.func @transform_0(%arg0: i32) -> (i32, i32) {
    %c0_i32 = arith.constant 0 : i32
    %c0_i32_0 = arith.constant 0 : i32
    return %arg0, %c0_i32 : i32, i32
  }
  func.func @transform_1(%arg0: i32) -> (i32, i32) {
    %c0_i32 = arith.constant 0 : i32
    %c0_i32_0 = arith.constant 0 : i32
    %c0_i32_1 = arith.constant 0 : i32
    return %c0_i32, %c0_i32_0 : i32, i32
  }
  func.func @transform_2(%arg0: i32) -> (i32, i32) {
    %c0_i32 = arith.constant 0 : i32
    %c0_i32_0 = arith.constant 0 : i32
    %c0_i32_1 = arith.constant 0 : i32
    return %c0_i32, %c0_i32_0 : i32, i32
  }
  func.func @transform_3(%arg0: i32) -> (i32, i32) {
    %c0_i32 = arith.constant 0 : i32
    %c0_i32_0 = arith.constant 0 : i32
    return %arg0, %c0_i32 : i32, i32
  }
  func.func @transform_4(%arg0: i32) -> (i32, i32) {
    %c0_i32 = arith.constant 0 : i32
    %c0_i32_0 = arith.constant 0 : i32
    return %arg0, %c0_i32 : i32, i32
  }
  func.func @transform_5(%arg0: i32) -> (i32, i32) {
    %c0_i32 = arith.constant 0 : i32
    %c0_i32_0 = arith.constant 0 : i32
    return %arg0, %c0_i32 : i32, i32
  }
  func.func @transform_6(%arg0: i32) -> (i32, i32) {
    %c0_i32 = arith.constant 0 : i32
    %c0_i32_0 = arith.constant 0 : i32
    return %arg0, %c0_i32 : i32, i32
  }
}

</mosaic_0001>

<llo_original>
// kernel: ca_net_forward.1
$region0: #{ca_net_forward.1}
  #allocation0 [shape = 'u32[]', space=smem, size = 0x4, offset = 0x4, fixed_abs, tag = 'smem constant byte address 0x4 - core index']
  #allocation1 [shape = 'u32[144,128]{1,0:T(1,128)}', space=vmem, size = 0x12000, scoped, tag = 'internal scratch']
  %s0 = inlined_call_operand.vmem [shape: f32[16,150], index: 0, kind: input, shape index: {}]
  %s1 = inlined_call_operand.vmem [shape: f32[150,512], index: 1, kind: input, shape index: {}]
  %s2 = inlined_call_operand.vmem [shape: f32[1,512], index: 2, kind: input, shape index: {}]
  %s3 = inlined_call_operand.vmem [shape: f32[16,150], index: 3, kind: input, shape index: {}]
  %s4 = inlined_call_operand.hbm [shape: f32[16,150], index: 4, kind: output, shape index: {0}]
  %s5 = inlined_call_operand.hbm [shape: f32[16,150], index: 5, kind: output, shape index: {1}]
  %s6 = inlined_call_operand.hbm [shape: f32[16,150], index: 6, kind: output, shape index: {2}]
  %7 = xla_tuple %s4, %s5, %s6
  %s8 = sld [smem:[#allocation0]]
  $region65: #{ca_net_forward.1} parent=0
    _
  %s10 = ssub.s32 1, %s8
  %s11 = scalar_select 0, %s10, %s8
  $region1: #{ca_net_forward.1} parent=0
    #allocation2 [shape = 'u8[16384]{0}', space=vmem, size = 0x4000, scoped, tag = 'output window, operand 0']
    #allocation3 [shape = 's32[2]{0}', space=sflag, size = 0x8, scoped, tag = 'scoped memory for ca_net_forward.1']
    #allocation4 [shape = 'u8[16384]{0}', space=vmem, size = 0x4000, scoped, tag = 'output window, operand 1']
    #allocation5 [shape = 's32[2]{0}', space=sflag, size = 0x8, scoped, tag = 'scoped memory for ca_net_forward.1']
    #allocation6 [shape = 'u8[16384]{0}', space=vmem, size = 0x4000, scoped, tag = 'output window, operand 2']
    %12 = vsyncpa [#allocation3], 0
    %s13 = scalar_lea.sflag [#allocation3], 1
    %14 = vsyncpa %s13, 0
    %15 = vsyncpa [#allocation5], 0
    %s16 = scalar_lea.sflag [#allocation5], 1
    %17 = vsyncpa %s16, 0
    loop: start=0, step=1, limit=4
    $region2: #{ca_net_forward.1} parent=1 // loop_pre_header
      _
    $region3: #{ca_net_forward.1} parent=1 // loop_header
      %s19 = sphi 0, %s23
      %p20 = scmp.ge.s32.totalorder %s19, 4
      %s29 = sphi 0, %s31
      %s32 = sphi 0, %s29
      %s33 = sphi 0, %s32
      %s49 = sphi 0, %s33
      %s53 = sphi 0, %s53
      %s55 = sphi 0, %s53
      %s56 = sphi 0, %s55
      %s70 = sphi 0, %s56
      %s74 = sphi 0, %s74
      %s76 = sphi 0, %s74
      %s77 = sphi 0, %s76
      %s91 = sphi 0, %s77
      %s97 = sphi 0, %s99
      %s100 = sphi 0, %s97
      %s101 = sphi 0, %s100
      %s117 = sphi 0, %s101
      %s123 = sphi 0, %s125
      %s126 = sphi 0, %s123
      %s127 = sphi 0, %s126
      %s143 = sphi 0, %s127
      %s149 = sphi 0, %s151
      %s152 = sphi 0, %s149
      %s153 = sphi 0, %s152
      %s169 = sphi 0, %s153
      %s175 = sphi 0, %s177
      %s178 = sphi 0, %s175
      %s179 = sphi 0, %s178
      %s195 = sphi 0, %s179
    $region4: #{ca_net_forward.1} parent=1 // loop_header_branch
      %22 = sbr.rel (%p20) target = $region8
    $region5: #{ca_net_forward.1} parent=1 // loop_body
      %s24 = ssub.s32 %s19, 1
      %s25 = ssub.s32 %s19, 2
      %s26 = sadd.s32 %s19, 1
      %s27 = ssub.s32 %s19, %s26
      %p28 = scmp.eq.s32.totalorder %s27, 0
      %s30 = sadd.s32 %s29, 1
      %s31 = scalar_select %p28, %s29, %s30
      %p34 = pneg %p28
      %p35 = scmp.eq.s32.totalorder %s19, 1
      %p36 = por %p34, %p35
      %p37 = scmp.ne.s32.totalorder %s29, %s32
      %p38 = scmp.eq.s32.totalorder %s19, 0
      %p39 = por %p37, %p38
      %p40 = scmp.ne.s32.totalorder %s29, %s32
      %p41 = scmp.eq.s32.totalorder %s24, 1
      %p42 = por %p40, %p41
      %p43 = scmp.ne.s32.totalorder %s32, %s33
      %p44 = scmp.eq.s32.totalorder %s24, 0
      %p45 = por %p43, %p44
      %p46 = scmp.ne.s32.totalorder %s32, %s33
      %p47 = scmp.eq.s32.totalorder %s25, 1
      %p48 = por %p46, %p47
      %p50 = scmp.ne.s32.totalorder %s33, %s49
      %p51 = scmp.eq.s32.totalorder %s25, 0
      %p52 = por %p50, %p51
      %s54 = sadd.s32 %s53, 1
      %p57 = scmp.eq.s32.totalorder %s19, 1
      %p58 = scmp.ne.s32.totalorder %s53, %s55
      %p59 = scmp.eq.s32.totalorder %s19, 0
      %p60 = por %p58, %p59
      %p61 = scmp.ne.s32.totalorder %s53, %s55
      %p62 = scmp.eq.s32.totalorder %s24, 1
      %p63 = por %p61, %p62
      %p64 = scmp.ne.s32.totalorder %s55, %s56
      %p65 = scmp.eq.s32.totalorder %s24, 0
      %p66 = por %p64, %p65
      %p67 = scmp.ne.s32.totalorder %s55, %s56
      %p68 = scmp.eq.s32.totalorder %s25, 1
      %p69 = por %p67, %p68
      %p71 = scmp.ne.s32.totalorder %s56, %s70
      %p72 = scmp.eq.s32.totalorder %s25, 0
      %p73 = por %p71, %p72
      %s75 = sadd.s32 %s74, 1
      %p78 = scmp.eq.s32.totalorder %s19, 1
      %p79 = scmp.ne.s32.totalorder %s74, %s76
      %p80 = scmp.eq.s32.totalorder %s19, 0
      %p81 = por %p79, %p80
      %p82 = scmp.ne.s32.totalorder %s74, %s76
      %p83 = scmp.eq.s32.totalorder %s24, 1
      %p84 = por %p82, %p83
      %p85 = scmp.ne.s32.totalorder %s76, %s77
      %p86 = scmp.eq.s32.totalorder %s24, 0
      %p87 = por %p85, %p86
      %p88 = scmp.ne.s32.totalorder %s76, %s77
      %p89 = scmp.eq.s32.totalorder %s25, 1
      %p90 = por %p88, %p89
      %p92 = scmp.ne.s32.totalorder %s77, %s91
      %p93 = scmp.eq.s32.totalorder %s25, 0
      %p94 = por %p92, %p93
      %s95 = ssub.s32 %s19, %s26
      %p96 = scmp.eq.s32.totalorder %s95, 0
      %s98 = sadd.s32 %s97, 1
      %s99 = scalar_select %p96, %s97, %s98
      %p102 = pneg %p96
      %p103 = scmp.eq.s32.totalorder %s19, 1
      %p104 = por %p102, %p103
      %p105 = scmp.ne.s32.totalorder %s97, %s100
      %p106 = scmp.eq.s32.totalorder %s19, 0
      %p107 = por %p105, %p106
      %p108 = scmp.ne.s32.totalorder %s97, %s100
      %p109 = scmp.eq.s32.totalorder %s24, 1
      %p110 = por %p108, %p109
      %p111 = scmp.ne.s32.totalorder %s100, %s101
      %p112 = scmp.eq.s32.totalorder %s24, 0
      %p113 = por %p111, %p112
      %p114 = scmp.ne.s32.totalorder %s100, %s101
      %p115 = scmp.eq.s32.totalorder %s25, 1
      %p116 = por %p114, %p115
      %p118 = scmp.ne.s32.totalorder %s101, %s117
      %p119 = scmp.eq.s32.totalorder %s25, 0
      %p120 = por %p118, %p119
      %s121 = ssub.s32 %s19, %s26
      %p122 = scmp.eq.s32.totalorder %s121, 0
      %s124 = sadd.s32 %s123, 1
      %s125 = scalar_select %p122, %s123, %s124
      %p128 = pneg %p122
      %p129 = scmp.eq.s32.totalorder %s19, 1
      %p130 = por %p128, %p129
      %p131 = scmp.ne.s32.totalorder %s123, %s126
      %p132 = scmp.eq.s32.totalorder %s19, 0
      %p133 = por %p131, %p132
      %p134 = scmp.ne.s32.totalorder %s123, %s126
      %p135 = scmp.eq.s32.totalorder %s24, 1
      %p136 = por %p134, %p135
      %p137 = scmp.ne.s32.totalorder %s126, %s127
      %p138 = scmp.eq.s32.totalorder %s24, 0
      %p139 = por %p137, %p138
      %p140 = scmp.ne.s32.totalorder %s126, %s127
      %p141 = scmp.eq.s32.totalorder %s25, 1
      %p142 = por %p140, %p141
      %p144 = scmp.ne.s32.totalorder %s127, %s143
      %p145 = scmp.eq.s32.totalorder %s25, 0
      %p146 = por %p144, %p145
      %s147 = ssub.s32 %s19, %s26
      %p148 = scmp.eq.s32.totalorder %s147, 0
      %s150 = sadd.s32 %s149, 1
      %s151 = scalar_select %p148, %s149, %s150
      %p154 = pneg %p148
      %p155 = scmp.eq.s32.totalorder %s19, 1
      %p156 = por %p154, %p155
      %p157 = scmp.ne.s32.totalorder %s149, %s152
      %p158 = scmp.eq.s32.totalorder %s19, 0
      %p159 = por %p157, %p158
      %p160 = scmp.ne.s32.totalorder %s149, %s152
      %p161 = scmp.eq.s32.totalorder %s24, 1
      %p162 = por %p160, %p161
      %p163 = scmp.ne.s32.totalorder %s152, %s153
      %p164 = scmp.eq.s32.totalorder %s24, 0
      %p165 = por %p163, %p164
      %p166 = scmp.ne.s32.totalorder %s152, %s153
      %p167 = scmp.eq.s32.totalorder %s25, 1
      %p168 = por %p166, %p167
      %p170 = scmp.ne.s32.totalorder %s153, %s169
      %p171 = scmp.eq.s32.totalorder %s25, 0
      %p172 = por %p170, %p171
      %s173 = ssub.s32 %s19, %s26
      %p174 = scmp.eq.s32.totalorder %s173, 0
      %s176 = sadd.s32 %s175, 1
      %s177 = scalar_select %p174, %s175, %s176
      %p180 = pneg %p174
      %p181 = scmp.eq.s32.totalorder %s19, 1
      %p182 = por %p180, %p181
      %p183 = scmp.ne.s32.totalorder %s175, %s178
      %p184 = scmp.eq.s32.totalorder %s19, 0
      %p185 = por %p183, %p184
      %p186 = scmp.ne.s32.totalorder %s175, %s178
      %p187 = scmp.eq.s32.totalorder %s24, 1
      %p188 = por %p186, %p187
      %p189 = scmp.ne.s32.totalorder %s178, %s179
      %p190 = scmp.eq.s32.totalorder %s24, 0
      %p191 = por %p189, %p190
      %p192 = scmp.ne.s32.totalorder %s178, %s179
      %p193 = scmp.eq.s32.totalorder %s25, 1
      %p194 = por %p192, %p193
      %p196 = scmp.ne.s32.totalorder %s179, %s195
      %p197 = scmp.eq.s32.totalorder %s25, 0
      %p198 = por %p196, %p197
      %p199 = scmp.le.s32.totalorder 1, %s19
      %p200 = scmp.lt.s32.totalorder %s19, 3
      %p201 = pnand %p199, %p200
      %p202 = pneg %p201
      // Predicated region
      $region9: #{ca_net_forward.1} parent=5 // pred_check
        _
      $region10: #{ca_net_forward.1} parent=5 // pred_check_branch
        %204 = sbr.rel (%p201) target = $region12
      $region11: #{ca_net_forward.1} parent=5 // pred_region
        %s205 = ssub.s32 %s19, 1
        // Predicated region
        $region13: #{ca_net_forward.1} parent=11 // pred_check
          %p206 = pneg %p66
        $region14: #{ca_net_forward.1} parent=11 // pred_check_branch
          %208 = sbr.rel (%p206) target = $region16
        $region15: #{ca_net_forward.1} parent=11 // pred_region
          _
        $region16: #{ca_net_forward.1} parent=11 // pred_fallthru
          _
        // Predicated region
        $region17: #{ca_net_forward.1} parent=11 // pred_check
          %p209 = pneg %p87
        $region18: #{ca_net_forward.1} parent=11 // pred_check_branch
          %211 = sbr.rel (%p209) target = $region20
        $region19: #{ca_net_forward.1} parent=11 // pred_region
          _
        $region20: #{ca_net_forward.1} parent=11 // pred_fallthru
          _
      $region12: #{ca_net_forward.1} parent=5 // pred_fallthru
        _
      %p212 = scmp.lt.s32.totalorder %s19, 2
      // Predicated region
      $region21: #{ca_net_forward.1} parent=5 // pred_check
        %p213 = pneg %p212
      $region22: #{ca_net_forward.1} parent=5 // pred_check_branch
        %215 = sbr.rel (%p213) target = $region24
      $region23: #{ca_net_forward.1} parent=5 // pred_region
        // Predicated region
        $region25: #{ca_net_forward.1} parent=23 // pred_check
          %p216 = pneg %p39
        $region26: #{ca_net_forward.1} parent=23 // pred_check_branch
          %218 = sbr.rel (%p216) target = $region28
        $region27: #{ca_net_forward.1} parent=23 // pred_region
          %p219 = scmp.lt.s32.totalorder %s19, 1
          %s220 = scalar_select %p219, %s19, 1
          %s221 = smul.addr %s220, 2
          %s222 = smul.addr %s221, 8
          %s223 = scalar_lea.vmem %s0, %s222
        $region28: #{ca_net_forward.1} parent=23 // pred_fallthru
          _
        // Predicated region
        $region29: #{ca_net_forward.1} parent=23 // pred_check
          %p224 = pneg %p107
        $region30: #{ca_net_forward.1} parent=23 // pred_check_branch
          %226 = sbr.rel (%p224) target = $region32
        $region31: #{ca_net_forward.1} parent=23 // pred_region
          %p227 = scmp.lt.s32.totalorder %s19, 1
          %s228 = scalar_select %p227, %s19, 1
          %s229 = smul.addr %s228, 2
          %s230 = smul.addr %s229, 8
          %s231 = scalar_lea.vmem %s3, %s230
        $region32: #{ca_net_forward.1} parent=23 // pred_fallthru
          _
      $region24: #{ca_net_forward.1} parent=5 // pred_fallthru
        _
      %p232 = scmp.le.s32.totalorder 1, %s19
      %p233 = scmp.lt.s32.totalorder %s19, 3
      %p234 = pnand %p232, %p233
      %p235 = pneg %p234
      // Predicated region
      $region33: #{ca_net_forward.1} parent=5 // pred_check
        _
      $region34: #{ca_net_forward.1} parent=5 // pred_check_branch
        %237 = sbr.rel (%p234) target = $region36
      $region35: #{ca_net_forward.1} parent=5 // pred_region
        %s238 = ssub.s32 %s19, 1
        %p239 = scmp.lt.s32.totalorder %s24, 1
        %s240 = scalar_select %p239, %s24, 1
        %s241 = smul.addr %s240, 2
        %s242 = smul.addr %s241, 8
        %s243 = scalar_lea.vmem %s0, %s242
        %p244 = pneg %p45
        %p245 = pneg %p42
        %p246 = pneg %p66
        %p247 = pneg %p63
        %p248 = pneg %p87
        %p249 = pneg %p84
        %p250 = scmp.lt.s32.totalorder %s24, 1
        %s251 = scalar_select %p250, %s24, 1
        %s252 = smul.addr %s251, 2
        %s253 = smul.addr %s252, 8
        %s254 = scalar_lea.vmem %s3, %s253
        %p255 = pneg %p113
        %p256 = pneg %p110
        %p257 = pneg %p139
        %p258 = pneg %p136
        %s259 = sand.u32 %s126, 1
        %s260 = scalar_lea.sflag [#allocation3], %s259
        %s261 = sand.u32 %s126, 1
        %s262 = smul.addr %s261, 16
        %s263 = scalar_lea.vmem [#allocation2], %s262
        %p264 = pneg %p165
        %p265 = pneg %p162
        %s266 = sand.u32 %s24, 1
        %s267 = scalar_lea.sflag [#allocation5], %s266
        %s268 = sand.u32 %s152, 1
        %s269 = smul.addr %s268, 16
        %s270 = scalar_lea.vmem [#allocation4], %s269
        %p271 = pneg %p191
        %p272 = pneg %p188
        %s273 = sand.u32 %s24, 1
        %s274 = scalar_lea.sflag [#allocation5], %s273
        %s275 = sand.u32 %s178, 1
        %s276 = smul.addr %s275, 16
        %s277 = scalar_lea.vmem [#allocation6], %s276
        %p278 = scmp.lt.s32.totalorder %s24, 1
        %s279 = scalar_select %p278, %s24, 1
        %s280 = smul.addr %s279, 2
        %s281 = smul.addr %s280, 8
        %s282 = scalar_lea.vmem %s0, %s281
        %p283 = scmp.lt.s32.totalorder %s24, 1
        %s284 = scalar_select %p283, %s24, 1
        %s285 = smul.addr %s284, 2
        %s286 = smul.addr %s285, 8
        %s287 = scalar_lea.vmem %s3, %s286
        %v288 = vld [vmem:[%s282] sm:$0xff]
        %v289 = vld [vmem:[%s282 + $0x8] sm:$0xff]
        %v290 = vld [vmem:[%s1] sm:$0xff]
        %v291 = vld [vmem:[%s1 + $0x8] sm:$0xff]
        %v292 = vld [vmem:[%s1 + $0x10] sm:$0xff]
        %v293 = vld [vmem:[%s1 + $0x18] sm:$0xff]
        %v294 = vld [vmem:[%s1 + $0x20] sm:$0xff]
        %v295 = vld [vmem:[%s1 + $0x28] sm:$0xff]
        %v296 = vld [vmem:[%s1 + $0x30] sm:$0xff]
        %v297 = vld [vmem:[%s1 + $0x38] sm:$0xff]
        %v298 = vld [vmem:[%s1 + $0x40] sm:$0xff]
        %v299 = vld [vmem:[%s1 + $0x48] sm:$0xff]
        %v300 = vld [vmem:[%s1 + $0x50] sm:$0xff]
        %v301 = vld [vmem:[%s1 + $0x58] sm:$0xff]
        %v302 = vld [vmem:[%s1 + $0x60] sm:$0xff]
        %v303 = vld [vmem:[%s1 + $0x68] sm:$0xff]
        %v304 = vld [vmem:[%s1 + $0x70] sm:$0xff]
        %v305 = vld [vmem:[%s1 + $0x78] sm:$0xff]
        %v306 = vld [vmem:[%s1 + $0x80] sm:$0xff]
        %v307 = vld [vmem:[%s1 + $0x88] sm:$0xff]
        %v308 = vld [vmem:[%s1 + $0x90] sm:$0xff]
        %v309 = vld [vmem:[%s1 + $0x98] sm:$0xff]
        %v310 = vld [vmem:[%s1 + $0xa0] sm:$0xff]
        %v311 = vld [vmem:[%s1 + $0xa8] sm:$0xff]
        %v312 = vld [vmem:[%s1 + $0xb0] sm:$0xff]
        %v313 = vld [vmem:[%s1 + $0xb8] sm:$0xff]
        %v314 = vld [vmem:[%s1 + $0xc0] sm:$0xff]
        %v315 = vld [vmem:[%s1 + $0xc8] sm:$0xff]
        %v316 = vld [vmem:[%s1 + $0xd0] sm:$0xff]
        %v317 = vld [vmem:[%s1 + $0xd8] sm:$0xff]
        %v318 = vld [vmem:[%s1 + $0xe0] sm:$0xff]
        %v319 = vld [vmem:[%s1 + $0xe8] sm:$0xff]
        %v320 = vld [vmem:[%s1 + $0xf0] sm:$0xff]
        %v321 = vld [vmem:[%s1 + $0xf8] sm:$0xff]
        %v322 = vld [vmem:[%s1 + $0x100] sm:$0xff]
        %v323 = vld [vmem:[%s1 + $0x108] sm:$0xff]
        %v324 = vld [vmem:[%s1 + $0x110] sm:$0xff]
        %v325 = vld [vmem:[%s1 + $0x118] sm:$0xff]
        %v326 = vld [vmem:[%s1 + $0x120] sm:$0xff]
        %v327 = vld [vmem:[%s1 + $0x128] sm:$0xff]
        %v328 = vld [vmem:[%s1 + $0x130] sm:$0xff]
        %v329 = vld [vmem:[%s1 + $0x138] sm:$0xff]
        %v330 = vld [vmem:[%s1 + $0x140] sm:$0xff]
        %v331 = vld [vmem:[%s1 + $0x148] sm:$0xff]
        %v332 = vld [vmem:[%s1 + $0x150] sm:$0xff]
        %v333 = vld [vmem:[%s1 + $0x158] sm:$0xff]
        %v334 = vld [vmem:[%s1 + $0x160] sm:$0xff]
        %v335 = vld [vmem:[%s1 + $0x168] sm:$0xff]
        %v336 = vld [vmem:[%s1 + $0x170] sm:$0xff]
        %v337 = vld [vmem:[%s1 + $0x178] sm:$0xff]
        %v338 = vld [vmem:[%s1 + $0x180] sm:$0xff]
        %v339 = vld [vmem:[%s1 + $0x188] sm:$0xff]
        %v340 = vld [vmem:[%s1 + $0x190] sm:$0xff]
        %v341 = vld [vmem:[%s1 + $0x198] sm:$0xff]
        %v342 = vld [vmem:[%s1 + $0x1a0] sm:$0xff]
        %v343 = vld [vmem:[%s1 + $0x1a8] sm:$0xff]
        %v344 = vld [vmem:[%s1 + $0x1b0] sm:$0xff]
        %v345 = vld [vmem:[%s1 + $0x1b8] sm:$0xff]
        %v346 = vld [vmem:[%s1 + $0x1c0] sm:$0xff]
        %v347 = vld [vmem:[%s1 + $0x1c8] sm:$0xff]
        %v348 = vld [vmem:[%s1 + $0x1d0] sm:$0xff]
        %v349 = vld [vmem:[%s1 + $0x1d8] sm:$0xff]
        %v350 = vld [vmem:[%s1 + $0x1e0] sm:$0xff]
        %v351 = vld [vmem:[%s1 + $0x1e8] sm:$0xff]
        %v352 = vld [vmem:[%s1 + $0x1f0] sm:$0xff]
        %v353 = vld [vmem:[%s1 + $0x1f8] sm:$0xff]
        %v354 = vld [vmem:[%s1 + $0x200] sm:$0xff]
        %v355 = vld [vmem:[%s1 + $0x208] sm:$0xff]
        %v356 = vld [vmem:[%s1 + $0x210] sm:$0xff]
        %v357 = vld [vmem:[%s1 + $0x218] sm:$0xff]
        %v358 = vld [vmem:[%s1 + $0x220] sm:$0xff]
        %v359 = vld [vmem:[%s1 + $0x228] sm:$0xff]
        %v360 = vld [vmem:[%s1 + $0x230] sm:$0xff]
        %v361 = vld [vmem:[%s1 + $0x238] sm:$0xff]
        %v362 = vld [vmem:[%s1 + $0x240] sm:$0x3f]
        %v363 = vld [vmem:[%s1 + $0x248] sm:$0x3f]
        %v364 = vld [vmem:[%s1 + $0x250] sm:$0x3f]
        %v365 = vld [vmem:[%s1 + $0x258] sm:$0x3f]
        %v366 = vld [vmem:[%s2] sm:$0xf]
        %v368 = vlaneseq
        %v369 = vshrl.u32 %v368, 7
        %v370 = vsub.s32 0, %v369
        %v371 = vrot.slane %v366, %v370
        %v372 = vlaneseq
        %v373 = vshrl.u32 %v372, 7
        %v374 = vsub.s32 1, %v373
        %v375 = vrot.slane %v366, %v374
        %v376 = vlaneseq
        %v377 = vshrl.u32 %v376, 7
        %v378 = vsub.s32 2, %v377
        %v379 = vrot.slane %v366, %v378
        %v380 = vlaneseq
        %v381 = vshrl.u32 %v380, 7
        %v382 = vsub.s32 3, %v381
        %v383 = vrot.slane %v366, %v382
        %vm388 = vcmask 179200
        %v390 = vsel %vm388, %v289, 0
        %vm392 = vcmask 1045504
        %v394 = vsel %vm392, %v362, 0
        %v397 = vsel %vm392, %v363, 0
        %v400 = vsel %vm392, %v364, 0
        %v403 = vsel %vm392, %v365, 0
        %405 = vmatprep.subr.mxu0 %v351
        %406 = vmatpush1.msra.mxu0 %v350
        %407 = vmatprep.subr.mxu0 %v347
        %408 = vmatpush1.msra.mxu0 %v346
        %409 = vmatprep.subr.mxu0 %v343
        %410 = vmatpush1.msra.mxu0 %v342
        %411 = vmatprep.subr.mxu0 %v339
        %412 = vmatpush1.msra.mxu0 %v338
        %413 = vmatprep.subr.mxu0 %v335
        %414 = vmatpush1.msra.mxu0 %v334
        %415 = vmatprep.subr.mxu0 %v331
        %416 = vmatpush1.msra.mxu0 %v330
        %417 = vmatprep.subr.mxu0 %v327
        %418 = vmatpush1.msra.mxu0 %v326
        %419 = vmatprep.subr.mxu0 %v323
        %420 = vmatpush1.msra.mxu0 %v322
        %421 = vmatprep.subr.mxu0 %v319
        %422 = vmatpush1.msra.mxu0 %v318
        %423 = vmatprep.subr.mxu0 %v315
        %424 = vmatpush1.msra.mxu0 %v314
        %425 = vmatprep.subr.mxu0 %v311
        %426 = vmatpush1.msra.mxu0 %v310
        %427 = vmatprep.subr.mxu0 %v307
        %428 = vmatpush1.msra.mxu0 %v306
        %429 = vmatprep.subr.mxu0 %v303
        %430 = vmatpush1.msra.mxu0 %v302
        %431 = vmatprep.subr.mxu0 %v299
        %432 = vmatpush1.msra.mxu0 %v298
        %433 = vmatprep.subr.mxu0 %v295
        %434 = vmatpush1.msra.mxu0 %v294
        %435 = vmatprep.subr.mxu0 %v291
        %436 = vmatpush1.msra.mxu0 %v290
        %437 = vmatprep.subr.mxu0 0.0
        %438 = vmatpush2.msra.mxu0 0.0
        %439 = vmatprep.subr.mxu0 0.0
        %440 = vmatpush2.msra.mxu0 0.0
        %441 = vmatprep.subr.mxu0 0.0
        %442 = vmatpush2.msra.mxu0 0.0
        %443 = vmatprep.subr.mxu0 0.0
        %444 = vmatpush2.msra.mxu0 0.0
        %445 = vmatprep.subr.mxu0 0.0
        %446 = vmatpush2.msra.mxu0 0.0
        %447 = vmatprep.subr.mxu0 0.0
        %448 = vmatpush2.msra.mxu0 0.0
        %449 = vmatprep.subr.mxu0 0.0
        %450 = vmatpush2.msra.mxu0 0.0
        %451 = vmatprep.subr.mxu0 0.0
        %452 = vmatpush2.msra.mxu0 0.0
        %453 = vmatprep.subr.mxu0 0.0
        %454 = vmatpush2.msra.mxu0 0.0
        %455 = vmatprep.subr.mxu0 0.0
        %456 = vmatpush2.msra.mxu0 0.0
        %457 = vmatprep.subr.mxu0 0.0
        %458 = vmatpush2.msra.mxu0 0.0
        %459 = vmatprep.subr.mxu0 0.0
        %460 = vmatpush2.msra.mxu0 0.0
        %461 = vmatprep.subr.mxu0 0.0
        %462 = vmatpush2.msra.mxu0 0.0
        %463 = vmatprep.subr.mxu0 %v397
        %464 = vmatpush2.msra.mxu0 %v394
        %465 = vmatprep.subr.mxu0 %v359
        %466 = vmatpush2.msra.mxu0 %v358
        %467 = vmatprep.subr.mxu0 %v355
        %468 = vmatpush2.msra.mxu0 %v354
        %469 = vmatprep.mubr.f32.mxu0 %v390
        %470 = vmatmul.mubr.f32.gmra.mxu0 %v288
        %v471 = vpop.f32.mrf.mxu0
        %v472 = vadd.f32 %v371, %v471
        %v473 = vpop.f32.mrf.mxu0
        %v474 = vadd.f32 %v375, %v473
        %475 = vdwg.mxu0
        %476 = vmatprep.subr.mxu0 %v353
        %477 = vmatpush1.msra.mxu0 %v352
        %478 = vmatprep.subr.mxu0 %v349
        %479 = vmatpush1.msra.mxu0 %v348
        %480 = vmatprep.subr.mxu0 %v345
        %481 = vmatpush1.msra.mxu0 %v344
        %482 = vmatprep.subr.mxu0 %v341
        %483 = vmatpush1.msra.mxu0 %v340
        %484 = vmatprep.subr.mxu0 %v337
        %485 = vmatpush1.msra.mxu0 %v336
        %486 = vmatprep.subr.mxu0 %v333
        %487 = vmatpush1.msra.mxu0 %v332
        %488 = vmatprep.subr.mxu0 %v329
        %489 = vmatpush1.msra.mxu0 %v328
        %490 = vmatprep.subr.mxu0 %v325
        %491 = vmatpush1.msra.mxu0 %v324
        %492 = vmatprep.subr.mxu0 %v321
        %493 = vmatpush1.msra.mxu0 %v320
        %494 = vmatprep.subr.mxu0 %v317
        %495 = vmatpush1.msra.mxu0 %v316
        %496 = vmatprep.subr.mxu0 %v313
        %497 = vmatpush1.msra.mxu0 %v312
        %498 = vmatprep.subr.mxu0 %v309
        %499 = vmatpush1.msra.mxu0 %v308
        %500 = vmatprep.subr.mxu0 %v305
        %501 = vmatpush1.msra.mxu0 %v304
        %502 = vmatprep.subr.mxu0 %v301
        %503 = vmatpush1.msra.mxu0 %v300
        %504 = vmatprep.subr.mxu0 %v297
        %505 = vmatpush1.msra.mxu0 %v296
        %506 = vmatprep.subr.mxu0 %v293
        %507 = vmatpush1.msra.mxu0 %v292
        %508 = vmatprep.subr.mxu0 0.0
        %509 = vmatpush2.msra.mxu0 0.0
        %510 = vmatprep.subr.mxu0 0.0
        %511 = vmatpush2.msra.mxu0 0.0
        %512 = vmatprep.subr.mxu0 0.0
        %513 = vmatpush2.msra.mxu0 0.0
        %514 = vmatprep.subr.mxu0 0.0
        %515 = vmatpush2.msra.mxu0 0.0
        %516 = vmatprep.subr.mxu0 0.0
        %517 = vmatpush2.msra.mxu0 0.0
        %518 = vmatprep.subr.mxu0 0.0
        %519 = vmatpush2.msra.mxu0 0.0
        %520 = vmatprep.subr.mxu0 0.0
        %521 = vmatpush2.msra.mxu0 0.0
        %522 = vmatprep.subr.mxu0 0.0
        %523 = vmatpush2.msra.mxu0 0.0
        %524 = vmatprep.subr.mxu0 0.0
        %525 = vmatpush2.msra.mxu0 0.0
        %526 = vmatprep.subr.mxu0 0.0
        %527 = vmatpush2.msra.mxu0 0.0
        %528 = vmatprep.subr.mxu0 0.0
        %529 = vmatpush2.msra.mxu0 0.0
        %530 = vmatprep.subr.mxu0 0.0
        %531 = vmatpush2.msra.mxu0 0.0
        %532 = vmatprep.subr.mxu0 0.0
        %533 = vmatpush2.msra.mxu0 0.0
        %534 = vmatprep.subr.mxu0 %v403
        %535 = vmatpush2.msra.mxu0 %v400
        %536 = vmatprep.subr.mxu0 %v361
        %537 = vmatpush2.msra.mxu0 %v360
        %538 = vmatprep.subr.mxu0 %v357
        %539 = vmatpush2.msra.mxu0 %v356
        %540 = vmatprep.mubr.f32.mxu0 %v390
        %541 = vmatmul.mubr.f32.gmra.mxu0 %v288
        %v542 = vpop.f32.mrf.mxu0
        %v543 = vadd.f32 %v379, %v542
        %v544 = vpop.f32.mrf.mxu0
        %v545 = vadd.f32 %v383, %v544
        %546 = vdwg.mxu0
        %v547 = vmax.f32 %v472, 0.0
        %v548 = vmax.f32 %v474, 0.0
        %v549 = vmax.f32 %v543, 0.0
        %v550 = vmax.f32 %v545, 0.0
        %v551 = vmul.f32 %v549, 0.5
        %v552 = vmul.f32 %v550, 0.5
        %v553 = vmul.f32 %v551, 1.442695
        %v554 = vpow.pop %v553
        %v555 = vmul.f32 %v552, 1.442695
        %v556 = vpow.pop %v555
        %v557 = vld [vmem:[%s287] sm:$0xff]
        %v558 = vld [vmem:[%s287 + $0x8] sm:$0xff]
        %v559 = vmul.f32 %v557, %v554
        %v560 = vmul.f32 %v558, %v556
        %v561 = vadd.f32 %v559, %v547
        %v562 = vadd.f32 %v560, %v548
        %563 = vst [vmem:[%s263] sm:$0xff] %v561
        %564 = vst.msk [vmem:[%s263 + $0x8] sm:$0xff] %vm388, %v562
        %565 = vst [vmem:[%s270] sm:$0xff] %v547
        %566 = vst.msk [vmem:[%s270 + $0x8] sm:$0xff] %vm388, %v548
        %567 = vst [vmem:[%s277] sm:$0xff] %v549
        %568 = vst.msk [vmem:[%s277 + $0x8] sm:$0xff] %vm388, %v550
        %s569 = sand.u32 %s126, 1
        %s570 = scalar_lea.sflag [#allocation3], %s569
        %s571 = sand.u32 %s126, 1
        %s572 = smul.addr %s571, 16
        %s573 = scalar_lea.vmem [#allocation2], %s572
        %s574 = sand.u32 %s24, 1
        %s575 = scalar_lea.sflag [#allocation5], %s574
        %s576 = sand.u32 %s152, 1
        %s577 = smul.addr %s576, 16
        %s578 = scalar_lea.vmem [#allocation4], %s577
        %s579 = sand.u32 %s24, 1
        %s580 = scalar_lea.sflag [#allocation5], %s579
        %s581 = sand.u32 %s178, 1
        %s582 = smul.addr %s581, 16
        %s583 = scalar_lea.vmem [#allocation6], %s582
        // Predicated region
        $region37: #{ca_net_forward.1} parent=35 // pred_check
          %p584 = pneg %p136
        $region38: #{ca_net_forward.1} parent=35 // pred_check_branch
          %586 = sbr.rel (%p584) target = $region40
        $region39: #{ca_net_forward.1} parent=35 // pred_region
          %s588 = ssub.s32 256, 256
          %589 = vsyncadd %s570, %s588
          %s590 = smul.addr %s24, 2
          %s591 = smul.addr %s590, 128
          %s592 = scalar_lea.hbm %s4, %s591
          %s594 = sshll.u32 %s573, 4
          %s595 = int_to_ptr.vmem [resolvable:$true] %s594
          %597 = dma.vmem_to_hbm [thread:$0]  %s595, 256, %s592, %s570
        $region40: #{ca_net_forward.1} parent=35 // pred_fallthru
          _
        // Predicated region
        $region41: #{ca_net_forward.1} parent=35 // pred_check
          %p598 = pneg %p162
        $region42: #{ca_net_forward.1} parent=35 // pred_check_branch
          %600 = sbr.rel (%p598) target = $region44
        $region43: #{ca_net_forward.1} parent=35 // pred_region
          %s602 = ssub.s32 256, 256
          %603 = vsyncadd %s575, %s602
          %s604 = smul.addr %s24, 2
          %s605 = smul.addr %s604, 128
          %s606 = scalar_lea.hbm %s5, %s605
          %s608 = sshll.u32 %s578, 4
          %s609 = int_to_ptr.vmem [resolvable:$true] %s608
          %611 = dma.vmem_to_hbm [thread:$0]  %s609, 256, %s606, %s575
        $region44: #{ca_net_forward.1} parent=35 // pred_fallthru
          _
        // Predicated region
        $region45: #{ca_net_forward.1} parent=35 // pred_check
          %p612 = pneg %p188
        $region46: #{ca_net_forward.1} parent=35 // pred_check_branch
          %614 = sbr.rel (%p612) target = $region48
        $region47: #{ca_net_forward.1} parent=35 // pred_region
          %s616 = ssub.s32 256, 256
          %617 = vsyncadd %s580, %s616
          %s618 = smul.addr %s24, 2
          %s619 = smul.addr %s618, 128
          %s620 = scalar_lea.hbm %s6, %s619
          %s622 = sshll.u32 %s583, 4
          %s623 = int_to_ptr.vmem [resolvable:$true] %s622
          %625 = dma.vmem_to_hbm [thread:$0]  %s623, 256, %s620, %s580
        $region48: #{ca_net_forward.1} parent=35 // pred_fallthru
          _
      $region36: #{ca_net_forward.1} parent=5 // pred_fallthru
        _
      %p626 = scmp.le.s32.totalorder 2, %s19
      // Predicated region
      $region49: #{ca_net_forward.1} parent=5 // pred_check
        %p627 = pneg %p626
      $region50: #{ca_net_forward.1} parent=5 // pred_check_branch
        %629 = sbr.rel (%p627) target = $region52
      $region51: #{ca_net_forward.1} parent=5 // pred_region
        %s630 = ssub.s32 %s19, 2
        // Predicated region
        $region53: #{ca_net_forward.1} parent=51 // pred_check
          %p631 = pneg %p142
        $region54: #{ca_net_forward.1} parent=51 // pred_check_branch
          %633 = sbr.rel (%p631) target = $region56
        $region55: #{ca_net_forward.1} parent=51 // pred_region
          %s634 = sand.u32 %s127, 1
          %s635 = scalar_lea.sflag [#allocation3], %s634
          %s636 = sand.u32 %s127, 1
          %s637 = smul.addr %s636, 16
          %s638 = scalar_lea.vmem [#allocation2], %s637
          %639 = dma.done %s635, 256
        $region56: #{ca_net_forward.1} parent=51 // pred_fallthru
          _
        // Predicated region
        $region57: #{ca_net_forward.1} parent=51 // pred_check
          %p640 = pneg %p168
        $region58: #{ca_net_forward.1} parent=51 // pred_check_branch
          %642 = sbr.rel (%p640) target = $region60
        $region59: #{ca_net_forward.1} parent=51 // pred_region
          %s643 = sand.u32 %s25, 1
          %s644 = scalar_lea.sflag [#allocation5], %s643
          %s645 = sand.u32 %s153, 1
          %s646 = smul.addr %s645, 16
          %s647 = scalar_lea.vmem [#allocation4], %s646
          %648 = dma.done %s644, 256
        $region60: #{ca_net_forward.1} parent=51 // pred_fallthru
          _
        // Predicated region
        $region61: #{ca_net_forward.1} parent=51 // pred_check
          %p649 = pneg %p194
        $region62: #{ca_net_forward.1} parent=51 // pred_check_branch
          %651 = sbr.rel (%p649) target = $region64
        $region63: #{ca_net_forward.1} parent=51 // pred_region
          %s652 = sand.u32 %s25, 1
          %s653 = scalar_lea.sflag [#allocation5], %s652
          %s654 = sand.u32 %s179, 1
          %s655 = smul.addr %s654, 16
          %s656 = scalar_lea.vmem [#allocation6], %s655
          %657 = dma.done %s653, 256
        $region64: #{ca_net_forward.1} parent=51 // pred_fallthru
          _
      $region52: #{ca_net_forward.1} parent=5 // pred_fallthru
        _
    $region6: #{ca_net_forward.1} parent=1 // loop_footer
      %s23 = sadd.s32 1, %s19
    $region7: #{ca_net_forward.1} parent=1 // loop_footer_branch
      %18 = sbr.rel target = $region3
    $region8: #{ca_net_forward.1} parent=1 // loop_exit
      _
    %658 = vsyncpa [#allocation3], 1
    %s659 = scalar_lea.sflag [#allocation3], 1
    %660 = vsyncpa %s659, 1
    %661 = vsyncpa [#allocation5], 1
    %s662 = scalar_lea.sflag [#allocation5], 1
    %663 = vsyncpa %s662, 1

</llo_original>
